<compile_context>
chip_gen: v7x
topology: tpu7x:2x2x1
jax: 0.10.0
libtpu: 0.0.40
codegen_flags: <defaults>
</compile_context>

<pallas_src>
import jax
import jax.numpy as jnp
from jax.experimental import pallas as pl
from jax.experimental.pallas import tpu as pltpu

EPS = 1e-5
LANE = 128
SUBLANE = 8


def _round_up(x, m):
    return ((x + m - 1) // m) * m


# ---------------------------------------------------------------------------
# Pass 1: column-wise sum / sum-of-squares over a 2D slab (row reduction).
# ---------------------------------------------------------------------------
def channel_sums(slab2d, *, tile_m=1024):
    """slab2d: (R, L) f32.  Returns (sum, sumsq), each (1, L) f32 column sums.
    Zero-padded rows are harmless (they add 0)."""
    R, L = slab2d.shape
    tile_m = min(tile_m, _round_up(R, SUBLANE))
    grid_m = -(-R // tile_m)
    r_pad = grid_m * tile_m
    if r_pad != R:
        slab2d = jnp.pad(slab2d, ((0, r_pad - R), (0, 0)))

    def kernel(x_ref, sum_ref, sq_ref):
        @pl.when(pl.program_id(0) == 0)
        def _init():
            sum_ref[...] = jnp.zeros_like(sum_ref)
            sq_ref[...] = jnp.zeros_like(sq_ref)

        xv = x_ref[...].astype(jnp.float32)
        sum_ref[...] += jnp.sum(xv, axis=0, keepdims=True)
        sq_ref[...] += jnp.sum(xv * xv, axis=0, keepdims=True)

    return pl.pallas_call(
        kernel,
        out_shape=(jax.ShapeDtypeStruct((1, L), jnp.float32),
                   jax.ShapeDtypeStruct((1, L), jnp.float32)),
        grid_spec=pltpu.PrefetchScalarGridSpec(
            num_scalar_prefetch=0,
            grid=(grid_m,),
            in_specs=[pl.BlockSpec((tile_m, L), lambda i: (i, 0))],
            out_specs=[pl.BlockSpec((1, L), lambda i: (0, 0)),
                       pl.BlockSpec((1, L), lambda i: (0, 0))],
        ),
        compiler_params=pltpu.CompilerParams(
            dimension_semantics=("arbitrary",)),
    )(slab2d)


# ---------------------------------------------------------------------------
# Pass 2: fused normalize + ReLU + valid conv (im2col-free, tap-accumulated)
# ---------------------------------------------------------------------------
def fused_bn_relu_conv(x_nhwc, w_taps, scale, shift, *, OH, mxu_dtype):
    """x_nhwc: (N, H, W_pad, C) f32 (channel-unpadded).
    w_taps: (KH, KW, C, OC_pad) in mxu_dtype.  scale/shift: (1, C) f32.
    Returns (N, OH, W_pad, OC_pad) f32; caller crops W_pad->OW and OC_pad->OC."""
    N, H, W_pad, C = x_nhwc.shape
    KH, KW, _, OC_pad = w_taps.shape
    assert W_pad % 16 == 0  # keeps the bf16 in-kernel reshapes layout-trivial

    def kernel(x_ref, w_ref, scale_ref, shift_ref, o_ref, nbuf_ref):
        i = pl.program_id(1)  # kernel-row tap: reduction axis (output resident)

        @pl.when(i == 0)
        def _prologue():
            # BN affine + ReLU + MXU-dtype cast, hoisted out of the tap loop:
            # done exactly once per image into a bf16 VMEM scratch.
            xv = x_ref[...].astype(jnp.float32)                  # (H, W_pad, C)
            scl = scale_ref[...].reshape(1, 1, C)
            sft = shift_ref[...].reshape(1, 1, C)
            nbuf_ref[...] = jnp.maximum(xv * scl + sft, 0.0).astype(nbuf_ref.dtype)
            o_ref[...] = jnp.zeros_like(o_ref)                   # init accumulator

        rows = nbuf_ref[pl.ds(i, OH), :, :]                      # (OH, W_pad, C) bf16
        lhs = rows.reshape(OH * W_pad, C)                        # trivial: W_pad%16==0
        w_i = w_ref[i]                                           # (KW, C, OC_pad)

        # TODO(synk): for large C (>=128) fold the KW taps into the contraction
        # (K = KW*C) and tile OC at 256 to fill the v6e/v7x 256x256 MXU.
        for j in range(KW):                                      # static column taps
            full = jnp.dot(lhs, w_i[j],
                           preferred_element_type=jnp.float32)   # (OH*W_pad, OC_pad)
            full = full.reshape(OH, W_pad, OC_pad)
            if j:
                # Align the column tap with an XLU rotate instead of a
                # sublane-misaligned slice-add.  out[w] = full[w + j]; wrapped
                # garbage lands in columns >= OW, cropped by the caller.
                full = pltpu.roll(full, shift=W_pad - j, axis=1)
            o_ref[...] += full                                   # per-tap +=: bounded live range

    flops = 2 * N * KH * KW * (OH * W_pad) * C * OC_pad
    bytes_accessed = (x_nhwc.size * x_nhwc.dtype.itemsize
                      + w_taps.size * w_taps.dtype.itemsize
                      + N * OH * W_pad * OC_pad * 4)

    # VMEM budget from the actual (lane-padded, double-buffered) blocks with 2x
    # headroom, kept under v7x's 64 MiB physical VMEM.
    # TODO(synk): add an OH-halo tile grid axis for large images on v7x.
    c_lanes = _round_up(C, LANE)
    est = (2 * H * W_pad * c_lanes * 4            # x block (f32), double-buffered
           + H * W_pad * c_lanes * 2              # normalized bf16 scratch
           + 2 * OH * W_pad * OC_pad * 4          # output block, double-buffered
           + 2 * KH * KW * _round_up(C, 16) * OC_pad * 2)   # weights
    vmem_limit = int(min(max(2 * est, 16 << 20), 64 << 20))

    return pl.pallas_call(
        kernel,
        out_shape=jax.ShapeDtypeStruct((N, OH, W_pad, OC_pad), jnp.float32),
        grid_spec=pltpu.PrefetchScalarGridSpec(
            num_scalar_prefetch=0,
            grid=(N, KH),
            in_specs=[
                # full image per n, constant over the tap axis -> one DMA per n
                pl.BlockSpec((None, H, W_pad, C), lambda n, i: (n, 0, 0, 0)),
                # full conv weight, constant index -> ONE DMA for the whole call
                pl.BlockSpec((KH, KW, C, OC_pad), lambda n, i: (0, 0, 0, 0)),
                pl.BlockSpec((1, C), lambda n, i: (0, 0)),
                pl.BlockSpec((1, C), lambda n, i: (0, 0)),
            ],
            out_specs=pl.BlockSpec((None, OH, W_pad, OC_pad),
                                   lambda n, i: (n, 0, 0, 0)),
            scratch_shapes=[pltpu.VMEM((H, W_pad, C), mxu_dtype)],
        ),
        compiler_params=pltpu.CompilerParams(
            # N parallel: feeds both v7x TensorCores when N >= 2; KH arbitrary
            # (output block is the resident accumulator across it).
            dimension_semantics=("parallel", "arbitrary"),
            vmem_limit_bytes=vmem_limit,
        ),
        cost_estimate=pl.CostEstimate(flops=flops, transcendentals=0,
                                      bytes_accessed=bytes_accessed),
    )(x_nhwc, w_taps, scale, shift)


# ---------------------------------------------------------------------------
# Full conv_block forward (block_type=0): BN -> ReLU -> (drop=identity) -> Conv
# ---------------------------------------------------------------------------
def conv_block_forward(x, conv_w, gamma, beta, *, mxu_dtype=jnp.bfloat16):
    """x: (N, C, H, W)  conv_w: (OC, C, KH, KW)  gamma/beta: (C,) -> (N, OC, OH, OW).
    MXU operands are bf16; VPU math and accumulation are f32."""
    N, C, H, W = x.shape
    OC, Cw, KH, KW = conv_w.shape
    assert Cw == C
    OH, OW = H - KH + 1, W - KW + 1
    # Invariant (why zero-padded W columns never leak into kept outputs):
    # a kept output column ow < OW only reads input columns ow+j <= OW-1+KW-1 = W-1.
    assert OW + KW - 1 == W

    OC_pad = _round_up(OC, LANE)
    W_pad = _round_up(W, 16)  # 16 = bf16 sublane tile: in-kernel reshapes stay trivial

    # NCHW -> NHWC once at the module boundary; channels stay UNPADDED in HBM
    # (128-lane padding only happens inside VMEM), W zero-padded to a sublane
    # tile (neutral for stats; never reaches kept output columns).
    # TODO(synk): fuse this transpose/pad into pass 1 (emit the slab as a second
    # output of the stats kernel) to save one full-slab HBM round trip.
    x_nhwc = jnp.transpose(x, (0, 2, 3, 1)).astype(jnp.float32)
    x_nhwc = jnp.pad(x_nhwc, ((0, 0), (0, 0), (0, W_pad - W), (0, 0)))

    # Pass 1: per-channel batch statistics.  View the slab as (rows, 128)
    # channel-interleaved so the reduction is lane-dense (stays HBM-bound);
    # fall back to a (rows, C) view when C does not divide 128.
    total = N * H * W_pad * C
    lane_dense = (LANE % C == 0) and (total % LANE == 0)
    L = LANE if lane_dense else C
    s, sq = channel_sums(x_nhwc.reshape(total // L, L))
    s = s.reshape(-1, C).sum(axis=0)          # fold interleaved groups -> (C,)
    sq = sq.reshape(-1, C).sum(axis=0)

    # Fold BN (batch stats, biased variance, training mode) + affine into one
    # per-channel FMA: scale = gamma*rsqrt(var+eps), shift = beta - mean*scale.
    # O(C) scalar work, done once in the wrapper.
    count = float(N * H * W)
    mean = s / count
    # clamp: E[x^2] - mean^2 can dip slightly negative from cancellation.
    # TODO(synk): shifted / Welford variance if inputs can have large offsets.
    var = jnp.maximum(sq / count - mean * mean, 0.0)
    scale = gamma.astype(jnp.float32) * jax.lax.rsqrt(var + EPS)
    shift = beta.astype(jnp.float32) - mean * scale
    scale = scale.reshape(1, C)
    shift = shift.reshape(1, C)

    # Conv weight: (OC, C, KH, KW) -> (KH, KW, C, OC_pad) in MXU dtype (bf16).
    w_taps = jnp.transpose(conv_w, (2, 3, 1, 0)).astype(jnp.float32)
    w_taps = jnp.pad(w_taps, ((0, 0), (0, 0), (0, 0), (0, OC_pad - OC)))
    w_taps = w_taps.astype(mxu_dtype)

    # Pass 2: fused normalize + ReLU + valid conv.
    out = fused_bn_relu_conv(x_nhwc, w_taps, scale, shift, OH=OH,
                             mxu_dtype=mxu_dtype)

    out = out[:, :, :OW, :OC]                 # crop W_pad / OC lane padding
    return jnp.transpose(out, (0, 3, 1, 2))   # back to NCHW (module I/O contract)


# ---------------------------------------------------------------------------
# Pure-JAX references for correctness checks
# ---------------------------------------------------------------------------
def reference_forward(x, conv_w, gamma, beta, mxu_dtype=jnp.float32):
    mean = jnp.mean(x, axis=(0, 2, 3), keepdims=True)
    var = jnp.var(x, axis=(0, 2, 3), keepdims=True)  # biased (training-mode BN)
    y = (x - mean) * jax.lax.rsqrt(var + EPS)
    y = y * gamma.reshape(1, -1, 1, 1) + beta.reshape(1, -1, 1, 1)
    y = jnp.maximum(y, 0.0)
    return jax.lax.conv_general_dilated(
        y.astype(mxu_dtype), conv_w.astype(mxu_dtype),
        window_strides=(1, 1), padding="VALID",
        dimension_numbers=("NCHW", "OIHW", "NCHW"),
        preferred_element_type=jnp.float32)


if __name__ == "__main__":
    # conv_block(in_channels=4, out_channels=8, kernel_size=3) with defaults.
    N, C_in, H, W = 2, 4, 16, 16
    C_out, K = 8, 3

    key = jax.random.PRNGKey(0)
    kx, kw, kg, kb = jax.random.split(key, 4)
    x = jax.random.normal(kx, (N, C_in, H, W), dtype=jnp.float32)
    conv_w = jax.random.normal(kw, (C_out, C_in, K, K), dtype=jnp.float32) * 0.1
    gamma = 1.0 + 0.1 * jax.random.normal(kg, (C_in,), dtype=jnp.float32)
    beta = 0.1 * jax.random.normal(kb, (C_in,), dtype=jnp.float32)

    out = jax.block_until_ready(conv_block_forward(x, conv_w, gamma, beta))
    assert out.shape == (N, C_out, H - K + 1, W - K + 1)

    # Tight check against a reference using the same bf16 MXU operands.
    ref_bf16 = reference_forward(x, conv_w, gamma, beta, mxu_dtype=jnp.bfloat16)
    assert jnp.allclose(out, ref_bf16, atol=1e-2, rtol=1e-2)
    # Loose check against the pure-f32 reference (difference = bf16 MXU rounding).
    ref_f32 = reference_forward(x, conv_w, gamma, beta, mxu_dtype=jnp.float32)
    assert jnp.allclose(out, ref_f32, atol=5e-2, rtol=5e-2)

    print("KERNEL_OK")
</pallas_src>

<mosaic_0001>
module attributes {stable_mosaic.version = 11 : i64} {
  func.func @kernel(%arg0: i32, %arg1: memref<16x128xf32, #tpu.memory_space<vmem>>, %arg2: memref<1x128xf32, #tpu.memory_space<vmem>>, %arg3: memref<1x128xf32, #tpu.memory_space<vmem>>) attributes {dimension_semantics = [#tpu.dimension_semantics<arbitrary>], iteration_bounds = array<i64: 1>, scalar_prefetch = 0 : i64, scratch_operands = 0 : i64, tpu.core_type = #tpu.core_type<tc>, window_params = [{transform_indices = @transform_0, window_bounds = array<i64: 16, 128>}, {pipeline_mode = #tpu.pipeline_mode<synchronous>, transform_indices = @transform_1, window_bounds = array<i64: 1, 128>}, {pipeline_mode = #tpu.pipeline_mode<synchronous>, transform_indices = @transform_2, window_bounds = array<i64: 1, 128>}]} {
    %c0_i32 = arith.constant 0 : i32
    %0 = arith.cmpi eq, %arg0, %c0_i32 : i32
    %1 = arith.extui %0 : i1 to i32
    %c0_i32_0 = arith.constant 0 : i32
    %2 = arith.cmpi ne, %1, %c0_i32_0 : i32
    scf.if %2 {
      %cst_11 = arith.constant 0.000000e+00 : f32
      %15 = vector.broadcast %cst_11 : f32 to vector<1x128xf32>
      %c0_12 = arith.constant 0 : index
      %c0_13 = arith.constant 0 : index
      %16 = vector.load %arg2[%c0_12, %c0_13] : memref<1x128xf32, #tpu.memory_space<vmem>>, vector<1x128xf32>
      tpu.vector_store %arg2[%c0_12, %c0_13], %15 {strides = array<i32>} : memref<1x128xf32, #tpu.memory_space<vmem>>, vector<1x128xf32>,
      %cst_14 = arith.constant 0.000000e+00 : f32
      %17 = vector.broadcast %cst_14 : f32 to vector<1x128xf32>
      %c0_15 = arith.constant 0 : index
      %c0_16 = arith.constant 0 : index
      %18 = vector.load %arg3[%c0_15, %c0_16] : memref<1x128xf32, #tpu.memory_space<vmem>>, vector<1x128xf32>
      tpu.vector_store %arg3[%c0_15, %c0_16], %17 {strides = array<i32>} : memref<1x128xf32, #tpu.memory_space<vmem>>, vector<1x128xf32>,
    } else {
    }
    %c0 = arith.constant 0 : index
    %c0_1 = arith.constant 0 : index
    %3 = vector.load %arg1[%c0, %c0_1] : memref<16x128xf32, #tpu.memory_space<vmem>>, vector<16x128xf32>
    %c0_2 = arith.constant 0 : index
    %c0_3 = arith.constant 0 : index
    %4 = vector.load %arg2[%c0_2, %c0_3] : memref<1x128xf32, #tpu.memory_space<vmem>>, vector<1x128xf32>
    %cst = arith.constant dense<0.000000e+00> : vector<128xf32>
    %5 = vector.multi_reduction <add>, %3, %cst [0] : vector<16x128xf32> to vector<128xf32>
    %6 = vector.shape_cast %5 : vector<128xf32> to vector<1x128xf32>
    %7 = arith.addf %4, %6 : vector<1x128xf32>
    %c0_4 = arith.constant 0 : index
    %c0_5 = arith.constant 0 : index
    %8 = vector.load %arg2[%c0_4, %c0_5] : memref<1x128xf32, #tpu.memory_space<vmem>>, vector<1x128xf32>
    tpu.vector_store %arg2[%c0_4, %c0_5], %7 {strides = array<i32>} : memref<1x128xf32, #tpu.memory_space<vmem>>, vector<1x128xf32>,
    %c0_6 = arith.constant 0 : index
    %c0_7 = arith.constant 0 : index
    %9 = vector.load %arg3[%c0_6, %c0_7] : memref<1x128xf32, #tpu.memory_space<vmem>>, vector<1x128xf32>
    %10 = arith.mulf %3, %3 : vector<16x128xf32>
    %cst_8 = arith.constant dense<0.000000e+00> : vector<128xf32>
    %11 = vector.multi_reduction <add>, %10, %cst_8 [0] : vector<16x128xf32> to vector<128xf32>
    %12 = vector.shape_cast %11 : vector<128xf32> to vector<1x128xf32>
    %13 = arith.addf %9, %12 : vector<1x128xf32>
    %c0_9 = arith.constant 0 : index
    %c0_10 = arith.constant 0 : index
    %14 = vector.load %arg3[%c0_9, %c0_10] : memref<1x128xf32, #tpu.memory_space<vmem>>, vector<1x128xf32>
    tpu.vector_store %arg3[%c0_9, %c0_10], %13 {strides = array<i32>} : memref<1x128xf32, #tpu.memory_space<vmem>>, vector<1x128xf32>,
    return
  }
  func.func @transform_0(%arg0: i32) -> (i32, i32) {
    %c0_i32 = arith.constant 0 : i32
    %c0_i32_0 = arith.constant 0 : i32
    return %arg0, %c0_i32 : i32, i32
  }
  func.func @transform_1(%arg0: i32) -> (i32, i32) {
    %c0_i32 = arith.constant 0 : i32
    %c0_i32_0 = arith.constant 0 : i32
    %c0_i32_1 = arith.constant 0 : i32
    return %c0_i32, %c0_i32_0 : i32, i32
  }
  func.func @transform_2(%arg0: i32) -> (i32, i32) {
    %c0_i32 = arith.constant 0 : i32
    %c0_i32_0 = arith.constant 0 : i32
    %c0_i32_1 = arith.constant 0 : i32
    return %c0_i32, %c0_i32_0 : i32, i32
  }
}

</mosaic_0001>

<llo_original>
// kernel: tpu_custom_call.1
$region0: #{tpu_custom_call.1}
  #allocation0 [shape = 'u32[]', space=smem, size = 0x4, offset = 0x4, fixed_abs, tag = 'smem constant byte address 0x4 - core index']
  #allocation1 [shape = 'u32[144,128]{1,0:T(1,128)}', space=vmem, size = 0x12000, scoped, tag = 'internal scratch']
  %s0 = inlined_call_operand.hbm [shape: f32[16,128], index: 0, kind: input, shape index: {}]
  %s1 = inlined_call_operand.hbm [shape: f32[1,128], index: 1, kind: output, shape index: {0}]
  %s2 = inlined_call_operand.hbm [shape: f32[1,128], index: 2, kind: output, shape index: {1}]
  %3 = xla_tuple %s1, %s2
  %s4 = sld [smem:[#allocation0]]
  $region30: #{tpu_custom_call.1} parent=0
    _
  %s6 = ssub.s32 1, %s4
  %s7 = scalar_select 0, %s6, %s4
  $region1: #{tpu_custom_call.1} parent=0
    #allocation2 [shape = 'u8[8192]{0}', space=vmem, size = 0x2000, scoped, tag = 'input window, operand 0, single buffered']
    #allocation3 [shape = 's32[1]{0}', space=sflag, size = 0x4, scoped, tag = 'scoped memory for tpu_custom_call.1']
    #allocation4 [shape = 's32[1]{0}', space=sflag, size = 0x4, scoped, tag = 'scoped memory for tpu_custom_call.1']
    #allocation5 [shape = 'u8[512]{0}', space=vmem, size = 0x400, scoped, tag = 'output window, operand 0, single buffered']
    #allocation6 [shape = 'u8[512]{0}', space=vmem, size = 0x400, scoped, tag = 'output window, operand 1, single buffered']
    #allocation7 [shape = 's32[1]{0}', space=sflag, size = 0x4, scoped, tag = 'scoped memory for tpu_custom_call.1']
    %8 = vsyncpa [#allocation3], 0
    %9 = vsyncpa [#allocation4], 0
    %10 = vsyncpa [#allocation7], 0
    // Predicated region
    $region2: #{tpu_custom_call.1} parent=1 // pred_check
      _
    $region3: #{tpu_custom_call.1} parent=1 // pred_check_branch
      %12 = sbr.rel (0) target = $region5
    $region4: #{tpu_custom_call.1} parent=1 // pred_region
      %s14 = ssub.s32 256, 256
      %15 = vsyncadd [#allocation3], %s14
      %s16 = sshll.u32 [#allocation2], 4
      %s17 = int_to_ptr.vmem [resolvable:$true] %s16
      %22 = dma.hbm_to_vmem [thread:$0]  %s0, 256, %s17, [#allocation3], 128, 128, 8
    $region5: #{tpu_custom_call.1} parent=1 // pred_fallthru
      _
    // Predicated region
    $region6: #{tpu_custom_call.1} parent=1 // pred_check
      _
    $region7: #{tpu_custom_call.1} parent=1 // pred_check_branch
      %24 = sbr.rel (0) target = $region9
    $region8: #{tpu_custom_call.1} parent=1 // pred_region
      %25 = dma.done [#allocation3], 256
    $region9: #{tpu_custom_call.1} parent=1 // pred_fallthru
      _
    %p26 = scmp.eq.s32.totalorder 0, 0
    // Predicated region
    $region10: #{tpu_custom_call.1} parent=1 // pred_check
      %p27 = pneg %p26
    $region11: #{tpu_custom_call.1} parent=1 // pred_check_branch
      %29 = sbr.rel (%p27) target = $region13
    $region12: #{tpu_custom_call.1} parent=1 // pred_region
      %30 = vst [vmem:[#allocation5] sm:$0x1] 0.0
      %31 = vst [vmem:[#allocation6] sm:$0x1] 0.0
    $region13: #{tpu_custom_call.1} parent=1 // pred_fallthru
      _
    %v32 = vld [vmem:[#allocation2] sm:$0xff]
    %v33 = vld [vmem:[#allocation2 + $0x8] sm:$0xff]
    %v34 = vld [vmem:[#allocation5] sm:$0x1]
    %v35 = vadd.f32 %v32, %v33
    %v36 = vrot.slane %v35, 4
    %v37 = vadd.f32 %v35, %v36
    %v38 = vrot.slane %v37, 2
    %v39 = vadd.f32 %v37, %v38
    %v40 = vrot.slane %v39, 1
    %v41 = vadd.f32 %v39, %v40
    %v42 = vadd.f32 %v34, %v41
    %43 = vst [vmem:[#allocation5] sm:$0x1] %v42
    %v44 = vld [vmem:[#allocation6] sm:$0x1]
    %v45 = vmul.f32 %v32, %v32
    %v46 = vmul.f32 %v33, %v33
    %v47 = vadd.f32 %v45, %v46
    %v48 = vrot.slane %v47, 4
    %v49 = vadd.f32 %v47, %v48
    %v50 = vrot.slane %v49, 2
    %v51 = vadd.f32 %v49, %v50
    %v52 = vrot.slane %v51, 1
    %v53 = vadd.f32 %v51, %v52
    %v54 = vadd.f32 %v44, %v53
    %55 = vst [vmem:[#allocation6] sm:$0x1] %v54
    // Predicated region
    $region14: #{tpu_custom_call.1} parent=1 // pred_check
      _
    $region15: #{tpu_custom_call.1} parent=1 // pred_check_branch
      %57 = sbr.rel (0) target = $region17
    $region16: #{tpu_custom_call.1} parent=1 // pred_region
      %s59 = ssub.s32 16, 16
      %60 = vsyncadd [#allocation4], %s59
      %s62 = sshll.u32 [#allocation5], 4
      %s63 = int_to_ptr.vmem [resolvable:$true] %s62
      %65 = dma.vmem_to_hbm [thread:$0]  %s63, 16, %s1, [#allocation4]
    $region17: #{tpu_custom_call.1} parent=1 // pred_fallthru
      _
    // Predicated region
    $region18: #{tpu_custom_call.1} parent=1 // pred_check
      _
    $region19: #{tpu_custom_call.1} parent=1 // pred_check_branch
      %67 = sbr.rel (0) target = $region21
    $region20: #{tpu_custom_call.1} parent=1 // pred_region
      %s69 = ssub.s32 16, 16
      %70 = vsyncadd [#allocation7], %s69
      %s72 = sshll.u32 [#allocation6], 4
      %s73 = int_to_ptr.vmem [resolvable:$true] %s72
      %75 = dma.vmem_to_hbm [thread:$0]  %s73, 16, %s2, [#allocation7]
    $region21: #{tpu_custom_call.1} parent=1 // pred_fallthru
      _
    // Predicated region
    $region22: #{tpu_custom_call.1} parent=1 // pred_check
      _
    $region23: #{tpu_custom_call.1} parent=1 // pred_check_branch
      %77 = sbr.rel (0) target = $region25
    $region24: #{tpu_custom_call.1} parent=1 // pred_region
      %78 = dma.done [#allocation4], 16
    $region25: #{tpu_custom_call.1} parent=1 // pred_fallthru
      _
    // Predicated region
    $region26: #{tpu_custom_call.1} parent=1 // pred_check
      _
    $region27: #{tpu_custom_call.1} parent=1 // pred_check_branch
      %80 = sbr.rel (0) target = $region29
    $region28: #{tpu_custom_call.1} parent=1 // pred_region
      %81 = dma.done [#allocation7], 16
    $region29: #{tpu_custom_call.1} parent=1 // pred_fallthru
      _
    %82 = vsyncpa [#allocation3], 1
    %83 = vsyncpa [#allocation4], 1
    %84 = vsyncpa [#allocation7], 1

</llo_original>
